<compile_context>
chip_gen: v5e
topology: v5e:2x2
jax: 0.10.0
libtpu: 0.0.40
codegen_flags: <defaults>
</compile_context>

<pallas_src>
import functools

import jax
import jax.numpy as jnp
import numpy as np
from jax.experimental import pallas as pl
from jax.experimental.pallas import tpu as pltpu

NEG_SLOPE = 0.01   # torch.nn.LeakyReLU default negative_slope
LANES = 128        # TPU lane width
SUBLANES = 8


def _leaky_relu(x):
    return jnp.where(x > 0, x, NEG_SLOPE * x)


def _round_up(n, m):
    return ((n + m - 1) // m) * m


def init_critic_params(key, input_size, hidden_size, output_size):
    """nn.Linear-style init; returns [(W [f_in, f_out], b [f_out]), ...]."""
    h2 = hidden_size // 2
    h4 = hidden_size // 4
    dims = [(input_size, h2), (h2, h2), (h2, h2), (h2, h4), (h4, output_size)]
    params = []
    for fan_in, fan_out in dims:
        key, kw, kb = jax.random.split(key, 3)
        bound = 1.0 / (fan_in ** 0.5)
        w = jax.random.uniform(kw, (fan_in, fan_out), jnp.float32, -bound, bound)
        b = jax.random.uniform(kb, (fan_out,), jnp.float32, -bound, bound)
        params.append((w, b))
    return params


def pack_params(params, input_size):
    """Pack all layers into one lane-dense f32 slab (feature-major layout).

    Per layer (bias folded into the weight block; activations carry a constant
    1.0 row so `W_pad @ h` already includes the bias):
      * layer 1      : [128, 128] block; [:f_out, :f_in] = W1^T,
                       [:f_out, k1-1] = b1, [127, k1-1] = 1.0 (seeds ones row)
      * layers 2..4  : [128, 128] block; [:f_out, :f_in] = Wl^T,
                       [:f_out, 127] = bl, [127, 127] = 1.0 (keeps ones row)
      * layer 5      : [round_up(out,8), 128] block; [:out, :f_in] = W5^T,
                       [:out, 127] = b5
    Returns (slab [rows, 128] f32, layout=((row_off, m_rows, k_lanes), ...), k1).
    """
    n_layers = len(params)
    k1 = max(SUBLANES, _round_up(input_size + 1, SUBLANES))
    blocks, layout, off = [], [], 0
    for li, (w, b) in enumerate(params):
        w = np.asarray(w, np.float32)
        b = np.asarray(b, np.float32).reshape(-1)
        f_in, f_out = w.shape
        is_last = li == n_layers - 1
        k = k1 if li == 0 else LANES
        assert f_in <= k - 1, "bias lane must stay free"
        if is_last:
            n_rows = _round_up(f_out, SUBLANES)
            m_rows = f_out
        else:
            assert f_out <= LANES - 1, "ones row (127) must stay free"
            n_rows = LANES
            m_rows = LANES
        blk = np.zeros((n_rows, LANES), np.float32)
        blk[:f_out, :f_in] = w.T
        blk[:f_out, k - 1] = b
        if not is_last:
            blk[LANES - 1, k - 1] = 1.0
        blocks.append(blk)
        layout.append((off, m_rows, k))
        off += n_rows
    slab = jnp.asarray(np.concatenate(blocks, axis=0))
    return slab, tuple(layout), k1


def _critic_kernel(x_ref, p_ref, out_ref, *, layout):
    """x_ref: [k1, N] feature-major augmented input (last row == 1.0).
    p_ref: [rows, 128] packed parameter slab. out_ref: [out, N] lane-dense."""
    # ---- layer 1: K=k1 MXU pass (bias folded via the ones row) -------------
    off, rows, k = layout[0]
    w = p_ref[off:off + rows, 0:k]                                   # [128, k1]
    h = _leaky_relu(jnp.dot(w, x_ref[...], preferred_element_type=jnp.float32))

    # ---- hidden layers: full 128x128 @ 128xN MXU passes ---------------------
    for off, rows, _ in layout[1:-1]:
        w = p_ref[off:off + rows, :]                                 # [128, 128]
        h = _leaky_relu(jnp.dot(w, h, preferred_element_type=jnp.float32))

    # ---- final linear layer (no activation): compact lane-dense output -----
    off, rows, _ = layout[-1]
    w = p_ref[off:off + rows, :]                                     # [out, 128]
    out_ref[...] = jnp.dot(w, h, preferred_element_type=jnp.float32
                           ).astype(out_ref.dtype)


def make_critic_forward(layout, k1, output_size, *, batch_tile=1024,
                        min_grid_batch=None):
    """Returns a jitted forward(state, action, param_slab) -> [B, output_size]."""
    if min_grid_batch is None:
        # >= 4 grid steps before the pipelined path engages: keeps both v7x TCs
        # busy and avoids pure per-step overhead on single-TC v5e/v6e.
        min_grid_batch = 4 * batch_tile
    kernel = functools.partial(_critic_kernel, layout=layout)

    @jax.jit
    def forward(state, action, param_slab):
        batch = state.shape[0]
        in_dim = state.shape[1] + action.shape[1]
        p_rows = param_slab.shape[0]

        # Augmented input: rows [0, in_dim) = concat(state, action),
        # row k1-1 = 1.0 (bias carrier), remaining rows = 0.
        x = jnp.concatenate([state.astype(jnp.float32),
                             action.astype(jnp.float32)], axis=1)    # [B, in]
        zeros = jnp.zeros((batch, k1 - in_dim - 1), jnp.float32)
        ones = jnp.ones((batch, 1), jnp.float32)
        x_aug = jnp.concatenate([x, zeros, ones], axis=1)            # [B, k1]

        if batch >= min_grid_batch:
            # Pipelined, batch-tiled path: pad B to a tile multiple (never the
            # unbounded single-shot path for huge batches).
            b_pad = _round_up(batch, batch_tile)
            x_aug = jnp.pad(x_aug, ((0, b_pad - batch), (0, 0)))
            x_t = x_aug.T                                            # [k1, b_pad]
            out = pl.pallas_call(
                kernel,
                out_shape=jax.ShapeDtypeStruct((output_size, b_pad), jnp.float32),
                grid=(b_pad // batch_tile,),
                in_specs=[
                    pl.BlockSpec((k1, batch_tile), lambda i: (0, i)),
                    pl.BlockSpec((p_rows, LANES), lambda i: (0, 0)),  # resident
                ],
                out_specs=pl.BlockSpec((output_size, batch_tile),
                                       lambda i: (0, i)),
                compiler_params=pltpu.CompilerParams(
                    dimension_semantics=("parallel",)),
            )(x_t, param_slab)
        else:
            # Small/medium batch latency path: single grid-less invocation,
            # everything resident in VMEM.
            x_t = x_aug.T                                            # [k1, B]
            out = pl.pallas_call(
                kernel,
                out_shape=jax.ShapeDtypeStruct((output_size, batch), jnp.float32),
            )(x_t, param_slab)

        return out[:, :batch].T                                      # [B, out]

    return forward


if __name__ == "__main__":
    # Pendulum-v1: state_dim = 3, action_dim = 1 -> input_size = 4
    state_dim, action_dim = 3, 1
    input_size = state_dim + action_dim
    hidden_size, output_size = 32, 1

    key = jax.random.PRNGKey(0)
    k_params, k_s1, k_a1, k_s2, k_a2 = jax.random.split(key, 5)

    params = init_critic_params(k_params, input_size, hidden_size, output_size)
    slab, layout, k1 = pack_params(params, input_size)

    def ref_forward(state, action, params):
        x = jnp.concatenate([state, action], axis=1)
        n = len(params)
        for i, (w, b) in enumerate(params):
            x = jnp.dot(x, w, precision=jax.lax.Precision.HIGHEST) + b
            if i < n - 1:
                x = jnp.where(x > 0, x, NEG_SLOPE * x)
        return x

    # ---- small-batch latency path -------------------------------------------
    batch = 8
    state = jax.random.normal(k_s1, (batch, state_dim), jnp.float32)
    action = jax.random.normal(k_a1, (batch, action_dim), jnp.float32)
    forward = make_critic_forward(layout, k1, output_size)
    out = forward(state, action, slab)
    jax.block_until_ready(out)
    assert out.shape == (batch, output_size)
    expected = ref_forward(state, action, params)
    assert jnp.allclose(out, expected, atol=1e-3, rtol=1e-3), (
        "max err {}".format(float(jnp.max(jnp.abs(out - expected)))))

    # ---- batched grid path (non-divisible B -> padded, 4 parallel steps) ----
    batch2 = 1000   # deliberately not a multiple of the tile
    state2 = jax.random.normal(k_s2, (batch2, state_dim), jnp.float32)
    action2 = jax.random.normal(k_a2, (batch2, action_dim), jnp.float32)
    forward_big = make_critic_forward(layout, k1, output_size,
                                      batch_tile=256, min_grid_batch=512)
    out2 = forward_big(state2, action2, slab)
    jax.block_until_ready(out2)
    assert out2.shape == (batch2, output_size)
    expected2 = ref_forward(state2, action2, params)
    assert jnp.allclose(out2, expected2, atol=1e-3, rtol=1e-3), (
        "max err {}".format(float(jnp.max(jnp.abs(out2 - expected2)))))

    print("KERNEL_OK")
</pallas_src>

<mosaic_0001>
module attributes {stable_mosaic.version = 11 : i64} {
  func.func @_critic_kernel(%arg0: memref<8x8xf32, #tpu.memory_space<vmem>>, %arg1: memref<520x128xf32, #tpu.memory_space<vmem>>, %arg2: memref<1x8xf32, #tpu.memory_space<vmem>>) attributes {dimension_semantics = [], scalar_prefetch = 0 : i64, scratch_operands = 0 : i64, tpu.core_type = #tpu.core_type<tc>} {
    %c0 = arith.constant 0 : index
    %c0_0 = arith.constant 0 : index
    %0 = vector.load %arg1[%c0, %c0_0] : memref<520x128xf32, #tpu.memory_space<vmem>>, vector<128x8xf32>
    %c0_1 = arith.constant 0 : index
    %c0_2 = arith.constant 0 : index
    %1 = vector.load %arg0[%c0_1, %c0_2] : memref<8x8xf32, #tpu.memory_space<vmem>>, vector<8x8xf32>
    %cst = arith.constant dense<0.000000e+00> : vector<128x8xf32>
    %2 = tpu.matmul %0, %1, %cst {dimension_numbers = #tpu.dot_dimension_numbers<[1], [0], [0], [1], [0, 0, 1, 1], [], []>} : vector<128x8xf32>, vector<8x8xf32>, vector<128x8xf32> -> vector<128x8xf32>
    %cst_3 = arith.constant 0.000000e+00 : f32
    %3 = vector.broadcast %cst_3 : f32 to vector<128x8xf32>
    %4 = arith.cmpf ogt, %2, %3 : vector<128x8xf32>
    %cst_4 = arith.constant 0.00999999977 : f32
    %5 = vector.broadcast %cst_4 : f32 to vector<128x8xf32>
    %6 = arith.mulf %5, %2 : vector<128x8xf32>
    %7 = arith.select %4, %2, %6 : vector<128x8xi1>, vector<128x8xf32>
    %c128 = arith.constant 128 : index
    %c0_5 = arith.constant 0 : index
    %8 = vector.load %arg1[%c128, %c0_5] : memref<520x128xf32, #tpu.memory_space<vmem>>, vector<128x128xf32>
    %cst_6 = arith.constant dense<0.000000e+00> : vector<128x8xf32>
    %9 = tpu.matmul %8, %7, %cst_6 {dimension_numbers = #tpu.dot_dimension_numbers<[1], [0], [0], [1], [0, 0, 1, 1], [], []>} : vector<128x128xf32>, vector<128x8xf32>, vector<128x8xf32> -> vector<128x8xf32>
    %cst_7 = arith.constant 0.000000e+00 : f32
    %10 = vector.broadcast %cst_7 : f32 to vector<128x8xf32>
    %11 = arith.cmpf ogt, %9, %10 : vector<128x8xf32>
    %cst_8 = arith.constant 0.00999999977 : f32
    %12 = vector.broadcast %cst_8 : f32 to vector<128x8xf32>
    %13 = arith.mulf %12, %9 : vector<128x8xf32>
    %14 = arith.select %11, %9, %13 : vector<128x8xi1>, vector<128x8xf32>
    %c256 = arith.constant 256 : index
    %c0_9 = arith.constant 0 : index
    %15 = vector.load %arg1[%c256, %c0_9] : memref<520x128xf32, #tpu.memory_space<vmem>>, vector<128x128xf32>
    %cst_10 = arith.constant dense<0.000000e+00> : vector<128x8xf32>
    %16 = tpu.matmul %15, %14, %cst_10 {dimension_numbers = #tpu.dot_dimension_numbers<[1], [0], [0], [1], [0, 0, 1, 1], [], []>} : vector<128x128xf32>, vector<128x8xf32>, vector<128x8xf32> -> vector<128x8xf32>
    %cst_11 = arith.constant 0.000000e+00 : f32
    %17 = vector.broadcast %cst_11 : f32 to vector<128x8xf32>
    %18 = arith.cmpf ogt, %16, %17 : vector<128x8xf32>
    %cst_12 = arith.constant 0.00999999977 : f32
    %19 = vector.broadcast %cst_12 : f32 to vector<128x8xf32>
    %20 = arith.mulf %19, %16 : vector<128x8xf32>
    %21 = arith.select %18, %16, %20 : vector<128x8xi1>, vector<128x8xf32>
    %c384 = arith.constant 384 : index
    %c0_13 = arith.constant 0 : index
    %22 = vector.load %arg1[%c384, %c0_13] : memref<520x128xf32, #tpu.memory_space<vmem>>, vector<128x128xf32>
    %cst_14 = arith.constant dense<0.000000e+00> : vector<128x8xf32>
    %23 = tpu.matmul %22, %21, %cst_14 {dimension_numbers = #tpu.dot_dimension_numbers<[1], [0], [0], [1], [0, 0, 1, 1], [], []>} : vector<128x128xf32>, vector<128x8xf32>, vector<128x8xf32> -> vector<128x8xf32>
    %cst_15 = arith.constant 0.000000e+00 : f32
    %24 = vector.broadcast %cst_15 : f32 to vector<128x8xf32>
    %25 = arith.cmpf ogt, %23, %24 : vector<128x8xf32>
    %cst_16 = arith.constant 0.00999999977 : f32
    %26 = vector.broadcast %cst_16 : f32 to vector<128x8xf32>
    %27 = arith.mulf %26, %23 : vector<128x8xf32>
    %28 = arith.select %25, %23, %27 : vector<128x8xi1>, vector<128x8xf32>
    %c512 = arith.constant 512 : index
    %c0_17 = arith.constant 0 : index
    %29 = vector.load %arg1[%c512, %c0_17] : memref<520x128xf32, #tpu.memory_space<vmem>>, vector<1x128xf32>
    %cst_18 = arith.constant dense<0.000000e+00> : vector<1x8xf32>
    %30 = tpu.matmul %29, %28, %cst_18 {dimension_numbers = #tpu.dot_dimension_numbers<[1], [0], [0], [1], [0, 0, 1, 1], [], []>} : vector<1x128xf32>, vector<128x8xf32>, vector<1x8xf32> -> vector<1x8xf32>
    %c0_19 = arith.constant 0 : index
    %c0_20 = arith.constant 0 : index
    %31 = vector.load %arg2[%c0_19, %c0_20] : memref<1x8xf32, #tpu.memory_space<vmem>>, vector<1x8xf32>
    tpu.vector_store %arg2[%c0_19, %c0_20], %30 {strides = array<i32>} : memref<1x8xf32, #tpu.memory_space<vmem>>, vector<1x8xf32>,
    return
  }
}

</mosaic_0001>

<llo_original>
// kernel: forward.1
$region0: #{forward.1}
  #allocation0 [shape = 'u32[]', space=smem, size = 0x4, offset = 0x4, fixed_abs, tag = 'smem constant byte address 0x4 - core index']
  #allocation1 [shape = 'u32[72,128]{1,0:T(1,128)}', space=vmem, size = 0x9000, scoped, tag = 'internal scratch']
  %s0 = inlined_call_operand.vmem [shape: f32[8,8], index: 0, kind: input, shape index: {}]
  %s1 = inlined_call_operand.hbm [shape: f32[520,128], index: 1, kind: input, shape index: {}]
  %s2 = inlined_call_operand.hbm [shape: f32[1,8], index: 2, kind: output, shape index: {}]
  %s3 = sld [smem:[#allocation0]]
  $region22: #{forward.1} parent=0
    _
  %s5 = ssub.s32 1, %s3
  %s6 = scalar_select 0, %s5, %s3
  $region1: #{forward.1} parent=0
    #allocation2 [shape = 'u8[266240]{0}', space=vmem, size = 0x41000, scoped, tag = 'input window, operand 1, single buffered']
    #allocation3 [shape = 's32[1]{0}', space=sflag, size = 0x4, scoped, tag = 'scoped memory for forward.1']
    #allocation4 [shape = 's32[1]{0}', space=sflag, size = 0x4, scoped, tag = 'scoped memory for forward.1']
    #allocation5 [shape = 'u8[512]{0}', space=vmem, size = 0x400, scoped, tag = 'output window, operand 0, single buffered']
    %7 = vsyncpa [#allocation3], 0
    %8 = vsyncpa [#allocation4], 0
    // Predicated region
    $region2: #{forward.1} parent=1 // pred_check
      _
    $region3: #{forward.1} parent=1 // pred_check_branch
      %10 = sbr.rel (0) target = $region5
    $region4: #{forward.1} parent=1 // pred_region
      _
    $region5: #{forward.1} parent=1 // pred_fallthru
      _
    // Predicated region
    $region6: #{forward.1} parent=1 // pred_check
      _
    $region7: #{forward.1} parent=1 // pred_check_branch
      %12 = sbr.rel (0) target = $region9
    $region8: #{forward.1} parent=1 // pred_region
      %14 = vsyncadd [#allocation3], 0
      %s15 = sshll.u32 %s1, 4
      %s16 = int_to_ptr.hbm [resolvable:$true] %s15
      %s17 = sshll.u32 [#allocation2], 4
      %s18 = int_to_ptr.vmem [resolvable:$true] %s17
      %23 = dma.hbm_to_vmem [thread:$0]  %s16, 8320, %s18, [#allocation3], 128, 128, 8
    $region9: #{forward.1} parent=1 // pred_fallthru
      _
    // Predicated region
    $region10: #{forward.1} parent=1 // pred_check
      _
    $region11: #{forward.1} parent=1 // pred_check_branch
      %25 = sbr.rel (0) target = $region13
    $region12: #{forward.1} parent=1 // pred_region
      %27 = dma.done [#allocation3], 8320
    $region13: #{forward.1} parent=1 // pred_fallthru
      _
    %v28 = vld [vmem:[#allocation2] sm:$0xff]
    %v29 = vld [vmem:[#allocation2 + $0x8] sm:$0xff]
    %v30 = vld [vmem:[#allocation2 + $0x10] sm:$0xff]
    %v31 = vld [vmem:[#allocation2 + $0x18] sm:$0xff]
    %v32 = vld [vmem:[#allocation2 + $0x20] sm:$0xff]
    %v33 = vld [vmem:[#allocation2 + $0x28] sm:$0xff]
    %v34 = vld [vmem:[#allocation2 + $0x30] sm:$0xff]
    %v35 = vld [vmem:[#allocation2 + $0x38] sm:$0xff]
    %v36 = vld [vmem:[#allocation2 + $0x40] sm:$0xff]
    %v37 = vld [vmem:[#allocation2 + $0x48] sm:$0xff]
    %v38 = vld [vmem:[#allocation2 + $0x50] sm:$0xff]
    %v39 = vld [vmem:[#allocation2 + $0x58] sm:$0xff]
    %v40 = vld [vmem:[#allocation2 + $0x60] sm:$0xff]
    %v41 = vld [vmem:[#allocation2 + $0x68] sm:$0xff]
    %v42 = vld [vmem:[#allocation2 + $0x70] sm:$0xff]
    %v43 = vld [vmem:[#allocation2 + $0x78] sm:$0xff]
    %v44 = vld [vmem:[%s0] sm:$0xff]
    %vm45 = vcmask 64512
    %v47 = vsel %vm45, %v28, 0
    %v50 = vsel %vm45, %v29, 0
    %v53 = vsel %vm45, %v30, 0
    %v56 = vsel %vm45, %v31, 0
    %v59 = vsel %vm45, %v32, 0
    %v62 = vsel %vm45, %v33, 0
    %v65 = vsel %vm45, %v34, 0
    %v68 = vsel %vm45, %v35, 0
    %v71 = vsel %vm45, %v36, 0
    %v74 = vsel %vm45, %v37, 0
    %v77 = vsel %vm45, %v38, 0
    %v80 = vsel %vm45, %v39, 0
    %v83 = vsel %vm45, %v40, 0
    %v86 = vsel %vm45, %v41, 0
    %v89 = vsel %vm45, %v42, 0
    %v92 = vsel %vm45, %v43, 0
    %94 = vmatpush.msra.mxu0 0.0
    %95 = vmatpush.msra.mxu0 0.0
    %96 = vmatpush.msra.mxu0 0.0
    %97 = vmatpush.msra.mxu0 0.0
    %98 = vmatpush.msra.mxu0 0.0
    %99 = vmatpush.msra.mxu0 0.0
    %100 = vmatpush.msra.mxu0 0.0
    %101 = vmatpush.msra.mxu0 0.0
    %102 = vmatpush.msra.mxu0 0.0
    %103 = vmatpush.msra.mxu0 0.0
    %104 = vmatpush.msra.mxu0 0.0
    %105 = vmatpush.msra.mxu0 0.0
    %106 = vmatpush.msra.mxu0 0.0
    %107 = vmatpush.msra.mxu0 0.0
    %108 = vmatpush.msra.mxu0 0.0
    %109 = vmatpush.msra.mxu0 %v44
    %110 = vmatmul.f32.gmra.mxu0 %v47
    %v111 = vpop.f32.mrf.mxu0
    %v112 = vadd.f32 0.0, %v111
    %113 = vmatmul.f32.gmra.mxu0 %v50
    %v114 = vpop.f32.mrf.mxu0
    %v115 = vadd.f32 0.0, %v114
    %116 = vmatmul.f32.gmra.mxu0 %v53
    %v117 = vpop.f32.mrf.mxu0
    %v118 = vadd.f32 0.0, %v117
    %119 = vmatmul.f32.gmra.mxu0 %v56
    %v120 = vpop.f32.mrf.mxu0
    %v121 = vadd.f32 0.0, %v120
    %122 = vmatmul.f32.gmra.mxu0 %v59
    %v123 = vpop.f32.mrf.mxu0
    %v124 = vadd.f32 0.0, %v123
    %125 = vmatmul.f32.gmra.mxu0 %v62
    %v126 = vpop.f32.mrf.mxu0
    %v127 = vadd.f32 0.0, %v126
    %128 = vmatmul.f32.gmra.mxu0 %v65
    %v129 = vpop.f32.mrf.mxu0
    %v130 = vadd.f32 0.0, %v129
    %131 = vmatmul.f32.gmra.mxu0 %v68
    %v132 = vpop.f32.mrf.mxu0
    %v133 = vadd.f32 0.0, %v132
    %134 = vmatmul.f32.gmra.mxu0 %v71
    %v135 = vpop.f32.mrf.mxu0
    %v136 = vadd.f32 0.0, %v135
    %137 = vmatmul.f32.gmra.mxu0 %v74
    %v138 = vpop.f32.mrf.mxu0
    %v139 = vadd.f32 0.0, %v138
    %140 = vmatmul.f32.gmra.mxu0 %v77
    %v141 = vpop.f32.mrf.mxu0
    %v142 = vadd.f32 0.0, %v141
    %143 = vmatmul.f32.gmra.mxu0 %v80
    %v144 = vpop.f32.mrf.mxu0
    %v145 = vadd.f32 0.0, %v144
    %146 = vmatmul.f32.gmra.mxu0 %v83
    %v147 = vpop.f32.mrf.mxu0
    %v148 = vadd.f32 0.0, %v147
    %149 = vmatmul.f32.gmra.mxu0 %v86
    %v150 = vpop.f32.mrf.mxu0
    %v151 = vadd.f32 0.0, %v150
    %152 = vmatmul.f32.gmra.mxu0 %v89
    %v153 = vpop.f32.mrf.mxu0
    %v154 = vadd.f32 0.0, %v153
    %155 = vmatmul.f32.gmra.mxu0 %v92
    %v156 = vpop.f32.mrf.mxu0
    %v157 = vadd.f32 0.0, %v156
    %158 = vdwg.mxu0
    %vm159 = vcmp.gt.f32.partialorder %v112, 0.0
    %vm160 = vcmp.gt.f32.partialorder %v115, 0.0
    %vm161 = vcmp.gt.f32.partialorder %v118, 0.0
    %vm162 = vcmp.gt.f32.partialorder %v121, 0.0
    %vm163 = vcmp.gt.f32.partialorder %v124, 0.0
    %vm164 = vcmp.gt.f32.partialorder %v127, 0.0
    %vm165 = vcmp.gt.f32.partialorder %v130, 0.0
    %vm166 = vcmp.gt.f32.partialorder %v133, 0.0
    %vm167 = vcmp.gt.f32.partialorder %v136, 0.0
    %vm168 = vcmp.gt.f32.partialorder %v139, 0.0
    %vm169 = vcmp.gt.f32.partialorder %v142, 0.0
    %vm170 = vcmp.gt.f32.partialorder %v145, 0.0
    %vm171 = vcmp.gt.f32.partialorder %v148, 0.0
    %vm172 = vcmp.gt.f32.partialorder %v151, 0.0
    %vm173 = vcmp.gt.f32.partialorder %v154, 0.0
    %vm174 = vcmp.gt.f32.partialorder %v157, 0.0
    %v175 = vmul.f32 %v112, 0.01
    %v176 = vmul.f32 %v115, 0.01
    %v177 = vmul.f32 %v118, 0.01
    %v178 = vmul.f32 %v121, 0.01
    %v179 = vmul.f32 %v124, 0.01
    %v180 = vmul.f32 %v127, 0.01
    %v181 = vmul.f32 %v130, 0.01
    %v182 = vmul.f32 %v133, 0.01
    %v183 = vmul.f32 %v136, 0.01
    %v184 = vmul.f32 %v139, 0.01
    %v185 = vmul.f32 %v142, 0.01
    %v186 = vmul.f32 %v145, 0.01
    %v187 = vmul.f32 %v148, 0.01
    %v188 = vmul.f32 %v151, 0.01
    %v189 = vmul.f32 %v154, 0.01
    %v190 = vmul.f32 %v157, 0.01
    %v191 = vsel %vm159, %v112, %v175
    %v192 = vsel %vm160, %v115, %v176
    %v193 = vsel %vm161, %v118, %v177
    %v194 = vsel %vm162, %v121, %v178
    %v195 = vsel %vm163, %v124, %v179
    %v196 = vsel %vm164, %v127, %v180
    %v197 = vsel %vm165, %v130, %v181
    %v198 = vsel %vm166, %v133, %v182
    %v199 = vsel %vm167, %v136, %v183
    %v200 = vsel %vm168, %v139, %v184
    %v201 = vsel %vm169, %v142, %v185
    %v202 = vsel %vm170, %v145, %v186
    %v203 = vsel %vm171, %v148, %v187
    %v204 = vsel %vm172, %v151, %v188
    %v205 = vsel %vm173, %v154, %v189
    %v206 = vsel %vm174, %v157, %v190
    %v207 = vld [vmem:[#allocation2 + $0x80] sm:$0xff]
    %v208 = vld [vmem:[#allocation2 + $0x88] sm:$0xff]
    %v209 = vld [vmem:[#allocation2 + $0x90] sm:$0xff]
    %v210 = vld [vmem:[#allocation2 + $0x98] sm:$0xff]
    %v211 = vld [vmem:[#allocation2 + $0xa0] sm:$0xff]
    %v212 = vld [vmem:[#allocation2 + $0xa8] sm:$0xff]
    %v213 = vld [vmem:[#allocation2 + $0xb0] sm:$0xff]
    %v214 = vld [vmem:[#allocation2 + $0xb8] sm:$0xff]
    %v215 = vld [vmem:[#allocation2 + $0xc0] sm:$0xff]
    %v216 = vld [vmem:[#allocation2 + $0xc8] sm:$0xff]
    %v217 = vld [vmem:[#allocation2 + $0xd0] sm:$0xff]
    %v218 = vld [vmem:[#allocation2 + $0xd8] sm:$0xff]
    %v219 = vld [vmem:[#allocation2 + $0xe0] sm:$0xff]
    %v220 = vld [vmem:[#allocation2 + $0xe8] sm:$0xff]
    %v221 = vld [vmem:[#allocation2 + $0xf0] sm:$0xff]
    %v222 = vld [vmem:[#allocation2 + $0xf8] sm:$0xff]
    %223 = vmatpush.msra.mxu0 %v206
    %224 = vmatpush.msra.mxu0 %v205
    %225 = vmatpush.msra.mxu0 %v204
    %226 = vmatpush.msra.mxu0 %v203
    %227 = vmatpush.msra.mxu0 %v202
    %228 = vmatpush.msra.mxu0 %v201
    %229 = vmatpush.msra.mxu0 %v200
    %230 = vmatpush.msra.mxu0 %v199
    %231 = vmatpush.msra.mxu0 %v198
    %232 = vmatpush.msra.mxu0 %v197
    %233 = vmatpush.msra.mxu0 %v196
    %234 = vmatpush.msra.mxu0 %v195
    %235 = vmatpush.msra.mxu0 %v194
    %236 = vmatpush.msra.mxu0 %v193
    %237 = vmatpush.msra.mxu0 %v192
    %238 = vmatpush.msra.mxu0 %v191
    %239 = vmatmul.f32.gmra.mxu0 %v207
    %v240 = vpop.f32.mrf.mxu0
    %v241 = vadd.f32 0.0, %v240
    %242 = vmatmul.f32.gmra.mxu0 %v208
    %v243 = vpop.f32.mrf.mxu0
    %v244 = vadd.f32 0.0, %v243
    %245 = vmatmul.f32.gmra.mxu0 %v209
    %v246 = vpop.f32.mrf.mxu0
    %v247 = vadd.f32 0.0, %v246
    %248 = vmatmul.f32.gmra.mxu0 %v210
    %v249 = vpop.f32.mrf.mxu0
    %v250 = vadd.f32 0.0, %v249
    %251 = vmatmul.f32.gmra.mxu0 %v211
    %v252 = vpop.f32.mrf.mxu0
    %v253 = vadd.f32 0.0, %v252
    %254 = vmatmul.f32.gmra.mxu0 %v212
    %v255 = vpop.f32.mrf.mxu0
    %v256 = vadd.f32 0.0, %v255
    %257 = vmatmul.f32.gmra.mxu0 %v213
    %v258 = vpop.f32.mrf.mxu0
    %v259 = vadd.f32 0.0, %v258
    %260 = vmatmul.f32.gmra.mxu0 %v214
    %v261 = vpop.f32.mrf.mxu0
    %v262 = vadd.f32 0.0, %v261
    %263 = vmatmul.f32.gmra.mxu0 %v215
    %v264 = vpop.f32.mrf.mxu0
    %v265 = vadd.f32 0.0, %v264
    %266 = vmatmul.f32.gmra.mxu0 %v216
    %v267 = vpop.f32.mrf.mxu0
    %v268 = vadd.f32 0.0, %v267
    %269 = vmatmul.f32.gmra.mxu0 %v217
    %v270 = vpop.f32.mrf.mxu0
    %v271 = vadd.f32 0.0, %v270
    %272 = vmatmul.f32.gmra.mxu0 %v218
    %v273 = vpop.f32.mrf.mxu0
    %v274 = vadd.f32 0.0, %v273
    %275 = vmatmul.f32.gmra.mxu0 %v219
    %v276 = vpop.f32.mrf.mxu0
    %v277 = vadd.f32 0.0, %v276
    %278 = vmatmul.f32.gmra.mxu0 %v220
    %v279 = vpop.f32.mrf.mxu0
    %v280 = vadd.f32 0.0, %v279
    %281 = vmatmul.f32.gmra.mxu0 %v221
    %v282 = vpop.f32.mrf.mxu0
    %v283 = vadd.f32 0.0, %v282
    %284 = vmatmul.f32.gmra.mxu0 %v222
    %v285 = vpop.f32.mrf.mxu0
    %v286 = vadd.f32 0.0, %v285
    %287 = vdwg.mxu0
    %vm288 = vcmp.gt.f32.partialorder %v241, 0.0
    %vm289 = vcmp.gt.f32.partialorder %v244, 0.0
    %vm290 = vcmp.gt.f32.partialorder %v247, 0.0
    %vm291 = vcmp.gt.f32.partialorder %v250, 0.0
    %vm292 = vcmp.gt.f32.partialorder %v253, 0.0
    %vm293 = vcmp.gt.f32.partialorder %v256, 0.0
    %vm294 = vcmp.gt.f32.partialorder %v259, 0.0
    %vm295 = vcmp.gt.f32.partialorder %v262, 0.0
    %vm296 = vcmp.gt.f32.partialorder %v265, 0.0
    %vm297 = vcmp.gt.f32.partialorder %v268, 0.0
    %vm298 = vcmp.gt.f32.partialorder %v271, 0.0
    %vm299 = vcmp.gt.f32.partialorder %v274, 0.0
    %vm300 = vcmp.gt.f32.partialorder %v277, 0.0
    %vm301 = vcmp.gt.f32.partialorder %v280, 0.0
    %vm302 = vcmp.gt.f32.partialorder %v283, 0.0
    %vm303 = vcmp.gt.f32.partialorder %v286, 0.0
    %v304 = vmul.f32 %v241, 0.01
    %v305 = vmul.f32 %v244, 0.01
    %v306 = vmul.f32 %v247, 0.01
    %v307 = vmul.f32 %v250, 0.01
    %v308 = vmul.f32 %v253, 0.01
    %v309 = vmul.f32 %v256, 0.01
    %v310 = vmul.f32 %v259, 0.01
    %v311 = vmul.f32 %v262, 0.01
    %v312 = vmul.f32 %v265, 0.01
    %v313 = vmul.f32 %v268, 0.01
    %v314 = vmul.f32 %v271, 0.01
    %v315 = vmul.f32 %v274, 0.01
    %v316 = vmul.f32 %v277, 0.01
    %v317 = vmul.f32 %v280, 0.01
    %v318 = vmul.f32 %v283, 0.01
    %v319 = vmul.f32 %v286, 0.01
    %v320 = vsel %vm288, %v241, %v304
    %v321 = vsel %vm289, %v244, %v305
    %v322 = vsel %vm290, %v247, %v306
    %v323 = vsel %vm291, %v250, %v307
    %v324 = vsel %vm292, %v253, %v308
    %v325 = vsel %vm293, %v256, %v309
    %v326 = vsel %vm294, %v259, %v310
    %v327 = vsel %vm295, %v262, %v311
    %v328 = vsel %vm296, %v265, %v312
    %v329 = vsel %vm297, %v268, %v313
    %v330 = vsel %vm298, %v271, %v314
    %v331 = vsel %vm299, %v274, %v315
    %v332 = vsel %vm300, %v277, %v316
    %v333 = vsel %vm301, %v280, %v317
    %v334 = vsel %vm302, %v283, %v318
    %v335 = vsel %vm303, %v286, %v319
    %v336 = vld [vmem:[#allocation2 + $0x100] sm:$0xff]
    %v337 = vld [vmem:[#allocation2 + $0x108] sm:$0xff]
    %v338 = vld [vmem:[#allocation2 + $0x110] sm:$0xff]
    %v339 = vld [vmem:[#allocation2 + $0x118] sm:$0xff]
    %v340 = vld [vmem:[#allocation2 + $0x120] sm:$0xff]
    %v341 = vld [vmem:[#allocation2 + $0x128] sm:$0xff]
    %v342 = vld [vmem:[#allocation2 + $0x130] sm:$0xff]
    %v343 = vld [vmem:[#allocation2 + $0x138] sm:$0xff]
    %v344 = vld [vmem:[#allocation2 + $0x140] sm:$0xff]
    %v345 = vld [vmem:[#allocation2 + $0x148] sm:$0xff]
    %v346 = vld [vmem:[#allocation2 + $0x150] sm:$0xff]
    %v347 = vld [vmem:[#allocation2 + $0x158] sm:$0xff]
    %v348 = vld [vmem:[#allocation2 + $0x160] sm:$0xff]
    %v349 = vld [vmem:[#allocation2 + $0x168] sm:$0xff]
    %v350 = vld [vmem:[#allocation2 + $0x170] sm:$0xff]
    %v351 = vld [vmem:[#allocation2 + $0x178] sm:$0xff]
    %352 = vmatpush.msra.mxu0 %v335
    %353 = vmatpush.msra.mxu0 %v334
    %354 = vmatpush.msra.mxu0 %v333
    %355 = vmatpush.msra.mxu0 %v332
    %356 = vmatpush.msra.mxu0 %v331
    %357 = vmatpush.msra.mxu0 %v330
    %358 = vmatpush.msra.mxu0 %v329
    %359 = vmatpush.msra.mxu0 %v328
    %360 = vmatpush.msra.mxu0 %v327
    %361 = vmatpush.msra.mxu0 %v326
    %362 = vmatpush.msra.mxu0 %v325
    %363 = vmatpush.msra.mxu0 %v324
    %364 = vmatpush.msra.mxu0 %v323
    %365 = vmatpush.msra.mxu0 %v322
    %366 = vmatpush.msra.mxu0 %v321
    %367 = vmatpush.msra.mxu0 %v320
    %368 = vmatmul.f32.gmra.mxu0 %v336
    %v369 = vpop.f32.mrf.mxu0
    %v370 = vadd.f32 0.0, %v369
    %371 = vmatmul.f32.gmra.mxu0 %v337
    %v372 = vpop.f32.mrf.mxu0
    %v373 = vadd.f32 0.0, %v372
    %374 = vmatmul.f32.gmra.mxu0 %v338
    %v375 = vpop.f32.mrf.mxu0
    %v376 = vadd.f32 0.0, %v375
    %377 = vmatmul.f32.gmra.mxu0 %v339
    %v378 = vpop.f32.mrf.mxu0
    %v379 = vadd.f32 0.0, %v378
    %380 = vmatmul.f32.gmra.mxu0 %v340
    %v381 = vpop.f32.mrf.mxu0
    %v382 = vadd.f32 0.0, %v381
    %383 = vmatmul.f32.gmra.mxu0 %v341
    %v384 = vpop.f32.mrf.mxu0
    %v385 = vadd.f32 0.0, %v384
    %386 = vmatmul.f32.gmra.mxu0 %v342
    %v387 = vpop.f32.mrf.mxu0
    %v388 = vadd.f32 0.0, %v387
    %389 = vmatmul.f32.gmra.mxu0 %v343
    %v390 = vpop.f32.mrf.mxu0
    %v391 = vadd.f32 0.0, %v390
    %392 = vmatmul.f32.gmra.mxu0 %v344
    %v393 = vpop.f32.mrf.mxu0
    %v394 = vadd.f32 0.0, %v393
    %395 = vmatmul.f32.gmra.mxu0 %v345
    %v396 = vpop.f32.mrf.mxu0
    %v397 = vadd.f32 0.0, %v396
    %398 = vmatmul.f32.gmra.mxu0 %v346
    %v399 = vpop.f32.mrf.mxu0
    %v400 = vadd.f32 0.0, %v399
    %401 = vmatmul.f32.gmra.mxu0 %v347
    %v402 = vpop.f32.mrf.mxu0
    %v403 = vadd.f32 0.0, %v402
    %404 = vmatmul.f32.gmra.mxu0 %v348
    %v405 = vpop.f32.mrf.mxu0
    %v406 = vadd.f32 0.0, %v405
    %407 = vmatmul.f32.gmra.mxu0 %v349
    %v408 = vpop.f32.mrf.mxu0
    %v409 = vadd.f32 0.0, %v408
    %410 = vmatmul.f32.gmra.mxu0 %v350
    %v411 = vpop.f32.mrf.mxu0
    %v412 = vadd.f32 0.0, %v411
    %413 = vmatmul.f32.gmra.mxu0 %v351
    %v414 = vpop.f32.mrf.mxu0
    %v415 = vadd.f32 0.0, %v414
    %416 = vdwg.mxu0
    %vm417 = vcmp.gt.f32.partialorder %v370, 0.0
    %vm418 = vcmp.gt.f32.partialorder %v373, 0.0
    %vm419 = vcmp.gt.f32.partialorder %v376, 0.0
    %vm420 = vcmp.gt.f32.partialorder %v379, 0.0
    %vm421 = vcmp.gt.f32.partialorder %v382, 0.0
    %vm422 = vcmp.gt.f32.partialorder %v385, 0.0
    %vm423 = vcmp.gt.f32.partialorder %v388, 0.0
    %vm424 = vcmp.gt.f32.partialorder %v391, 0.0
    %vm425 = vcmp.gt.f32.partialorder %v394, 0.0
    %vm426 = vcmp.gt.f32.partialorder %v397, 0.0
    %vm427 = vcmp.gt.f32.partialorder %v400, 0.0
    %vm428 = vcmp.gt.f32.partialorder %v403, 0.0
    %vm429 = vcmp.gt.f32.partialorder %v406, 0.0
    %vm430 = vcmp.gt.f32.partialorder %v409, 0.0
    %vm431 = vcmp.gt.f32.partialorder %v412, 0.0
    %vm432 = vcmp.gt.f32.partialorder %v415, 0.0
    %v433 = vmul.f32 %v370, 0.01
    %v434 = vmul.f32 %v373, 0.01
    %v435 = vmul.f32 %v376, 0.01
    %v436 = vmul.f32 %v379, 0.01
    %v437 = vmul.f32 %v382, 0.01
    %v438 = vmul.f32 %v385, 0.01
    %v439 = vmul.f32 %v388, 0.01
    %v440 = vmul.f32 %v391, 0.01
    %v441 = vmul.f32 %v394, 0.01
    %v442 = vmul.f32 %v397, 0.01
    %v443 = vmul.f32 %v400, 0.01
    %v444 = vmul.f32 %v403, 0.01
    %v445 = vmul.f32 %v406, 0.01
    %v446 = vmul.f32 %v409, 0.01
    %v447 = vmul.f32 %v412, 0.01
    %v448 = vmul.f32 %v415, 0.01
    %v449 = vsel %vm417, %v370, %v433
    %v450 = vsel %vm418, %v373, %v434
    %v451 = vsel %vm419, %v376, %v435
    %v452 = vsel %vm420, %v379, %v436
    %v453 = vsel %vm421, %v382, %v437
    %v454 = vsel %vm422, %v385, %v438
    %v455 = vsel %vm423, %v388, %v439
    %v456 = vsel %vm424, %v391, %v440
    %v457 = vsel %vm425, %v394, %v441
    %v458 = vsel %vm426, %v397, %v442
    %v459 = vsel %vm427, %v400, %v443
    %v460 = vsel %vm428, %v403, %v444
    %v461 = vsel %vm429, %v406, %v445
    %v462 = vsel %vm430, %v409, %v446
    %v463 = vsel %vm431, %v412, %v447
    %v464 = vsel %vm432, %v415, %v448
    %v465 = vld [vmem:[#allocation2 + $0x180] sm:$0xff]
    %v466 = vld [vmem:[#allocation2 + $0x188] sm:$0xff]
    %v467 = vld [vmem:[#allocation2 + $0x190] sm:$0xff]
    %v468 = vld [vmem:[#allocation2 + $0x198] sm:$0xff]
    %v469 = vld [vmem:[#allocation2 + $0x1a0] sm:$0xff]
    %v470 = vld [vmem:[#allocation2 + $0x1a8] sm:$0xff]
    %v471 = vld [vmem:[#allocation2 + $0x1b0] sm:$0xff]
    %v472 = vld [vmem:[#allocation2 + $0x1b8] sm:$0xff]
    %v473 = vld [vmem:[#allocation2 + $0x1c0] sm:$0xff]
    %v474 = vld [vmem:[#allocation2 + $0x1c8] sm:$0xff]
    %v475 = vld [vmem:[#allocation2 + $0x1d0] sm:$0xff]
    %v476 = vld [vmem:[#allocation2 + $0x1d8] sm:$0xff]
    %v477 = vld [vmem:[#allocation2 + $0x1e0] sm:$0xff]
    %v478 = vld [vmem:[#allocation2 + $0x1e8] sm:$0xff]
    %v479 = vld [vmem:[#allocation2 + $0x1f0] sm:$0xff]
    %v480 = vld [vmem:[#allocation2 + $0x1f8] sm:$0xff]
    %481 = vmatpush.msra.mxu0 %v464
    %482 = vmatpush.msra.mxu0 %v463
    %483 = vmatpush.msra.mxu0 %v462
    %484 = vmatpush.msra.mxu0 %v461
    %485 = vmatpush.msra.mxu0 %v460
    %486 = vmatpush.msra.mxu0 %v459
    %487 = vmatpush.msra.mxu0 %v458
    %488 = vmatpush.msra.mxu0 %v457
    %489 = vmatpush.msra.mxu0 %v456
    %490 = vmatpush.msra.mxu0 %v455
    %491 = vmatpush.msra.mxu0 %v454
    %492 = vmatpush.msra.mxu0 %v453
    %493 = vmatpush.msra.mxu0 %v452
    %494 = vmatpush.msra.mxu0 %v451
    %495 = vmatpush.msra.mxu0 %v450
    %496 = vmatpush.msra.mxu0 %v449
    %497 = vmatmul.f32.gmra.mxu0 %v465
    %v498 = vpop.f32.mrf.mxu0
    %v499 = vadd.f32 0.0, %v498
    %500 = vmatmul.f32.gmra.mxu0 %v466
    %v501 = vpop.f32.mrf.mxu0
    %v502 = vadd.f32 0.0, %v501
    %503 = vmatmul.f32.gmra.mxu0 %v467
    %v504 = vpop.f32.mrf.mxu0
    %v505 = vadd.f32 0.0, %v504
    %506 = vmatmul.f32.gmra.mxu0 %v468
    %v507 = vpop.f32.mrf.mxu0
    %v508 = vadd.f32 0.0, %v507
    %509 = vmatmul.f32.gmra.mxu0 %v469
    %v510 = vpop.f32.mrf.mxu0
    %v511 = vadd.f32 0.0, %v510
    %512 = vmatmul.f32.gmra.mxu0 %v470
    %v513 = vpop.f32.mrf.mxu0
    %v514 = vadd.f32 0.0, %v513
    %515 = vmatmul.f32.gmra.mxu0 %v471
    %v516 = vpop.f32.mrf.mxu0
    %v517 = vadd.f32 0.0, %v516
    %518 = vmatmul.f32.gmra.mxu0 %v472
    %v519 = vpop.f32.mrf.mxu0
    %v520 = vadd.f32 0.0, %v519
    %521 = vmatmul.f32.gmra.mxu0 %v473
    %v522 = vpop.f32.mrf.mxu0
    %v523 = vadd.f32 0.0, %v522
    %524 = vmatmul.f32.gmra.mxu0 %v474
    %v525 = vpop.f32.mrf.mxu0
    %v526 = vadd.f32 0.0, %v525
    %527 = vmatmul.f32.gmra.mxu0 %v475
    %v528 = vpop.f32.mrf.mxu0
    %v529 = vadd.f32 0.0, %v528
    %530 = vmatmul.f32.gmra.mxu0 %v476
    %v531 = vpop.f32.mrf.mxu0
    %v532 = vadd.f32 0.0, %v531
    %533 = vmatmul.f32.gmra.mxu0 %v477
    %v534 = vpop.f32.mrf.mxu0
    %v535 = vadd.f32 0.0, %v534
    %536 = vmatmul.f32.gmra.mxu0 %v478
    %v537 = vpop.f32.mrf.mxu0
    %v538 = vadd.f32 0.0, %v537
    %539 = vmatmul.f32.gmra.mxu0 %v479
    %v540 = vpop.f32.mrf.mxu0
    %v541 = vadd.f32 0.0, %v540
    %542 = vmatmul.f32.gmra.mxu0 %v480
    %v543 = vpop.f32.mrf.mxu0
    %v544 = vadd.f32 0.0, %v543
    %545 = vdwg.mxu0
    %vm546 = vcmp.gt.f32.partialorder %v499, 0.0
    %vm547 = vcmp.gt.f32.partialorder %v502, 0.0
    %vm548 = vcmp.gt.f32.partialorder %v505, 0.0
    %vm549 = vcmp.gt.f32.partialorder %v508, 0.0
    %vm550 = vcmp.gt.f32.partialorder %v511, 0.0
    %vm551 = vcmp.gt.f32.partialorder %v514, 0.0
    %vm552 = vcmp.gt.f32.partialorder %v517, 0.0
    %vm553 = vcmp.gt.f32.partialorder %v520, 0.0
    %vm554 = vcmp.gt.f32.partialorder %v523, 0.0
    %vm555 = vcmp.gt.f32.partialorder %v526, 0.0
    %vm556 = vcmp.gt.f32.partialorder %v529, 0.0
    %vm557 = vcmp.gt.f32.partialorder %v532, 0.0
    %vm558 = vcmp.gt.f32.partialorder %v535, 0.0
    %vm559 = vcmp.gt.f32.partialorder %v538, 0.0
    %vm560 = vcmp.gt.f32.partialorder %v541, 0.0
    %vm561 = vcmp.gt.f32.partialorder %v544, 0.0
    %v562 = vmul.f32 %v499, 0.01
    %v563 = vmul.f32 %v502, 0.01
    %v564 = vmul.f32 %v505, 0.01
    %v565 = vmul.f32 %v508, 0.01
    %v566 = vmul.f32 %v511, 0.01
    %v567 = vmul.f32 %v514, 0.01
    %v568 = vmul.f32 %v517, 0.01
    %v569 = vmul.f32 %v520, 0.01
    %v570 = vmul.f32 %v523, 0.01
    %v571 = vmul.f32 %v526, 0.01
    %v572 = vmul.f32 %v529, 0.01
    %v573 = vmul.f32 %v532, 0.01
    %v574 = vmul.f32 %v535, 0.01
    %v575 = vmul.f32 %v538, 0.01
    %v576 = vmul.f32 %v541, 0.01
    %v577 = vmul.f32 %v544, 0.01
    %v578 = vsel %vm546, %v499, %v562
    %v579 = vsel %vm547, %v502, %v563
    %v580 = vsel %vm548, %v505, %v564
    %v581 = vsel %vm549, %v508, %v565
    %v582 = vsel %vm550, %v511, %v566
    %v583 = vsel %vm551, %v514, %v567
    %v584 = vsel %vm552, %v517, %v568
    %v585 = vsel %vm553, %v520, %v569
    %v586 = vsel %vm554, %v523, %v570
    %v587 = vsel %vm555, %v526, %v571
    %v588 = vsel %vm556, %v529, %v572
    %v589 = vsel %vm557, %v532, %v573
    %v590 = vsel %vm558, %v535, %v574
    %v591 = vsel %vm559, %v538, %v575
    %v592 = vsel %vm560, %v541, %v576
    %v593 = vsel %vm561, %v544, %v577
    %v594 = vld [vmem:[#allocation2 + $0x200] sm:$0x1]
    %595 = vmatpush.msra.mxu0 %v593
    %596 = vmatpush.msra.mxu0 %v592
    %597 = vmatpush.msra.mxu0 %v591
    %598 = vmatpush.msra.mxu0 %v590
    %599 = vmatpush.msra.mxu0 %v589
    %600 = vmatpush.msra.mxu0 %v588
    %601 = vmatpush.msra.mxu0 %v587
    %602 = vmatpush.msra.mxu0 %v586
    %603 = vmatpush.msra.mxu0 %v585
    %604 = vmatpush.msra.mxu0 %v584
    %605 = vmatpush.msra.mxu0 %v583
    %606 = vmatpush.msra.mxu0 %v582
    %607 = vmatpush.msra.mxu0 %v581
    %608 = vmatpush.msra.mxu0 %v580
    %609 = vmatpush.msra.mxu0 %v579
    %610 = vmatpush.msra.mxu0 %v578
    %611 = vmatmul.f32.gmra.mxu0 %v594
    %v612 = vpop.f32.mrf.mxu0
    %v613 = vadd.f32 0.0, %v612
    %614 = vdwg.mxu0
    %vm615 = vcmask 57344
    %616 = vst.msk [vmem:[#allocation5] sm:$0x1] %vm615, %v613
    // Predicated region
    $region14: #{forward.1} parent=1 // pred_check
      _
    $region15: #{forward.1} parent=1 // pred_check_branch
      %618 = sbr.rel (0) target = $region17
    $region16: #{forward.1} parent=1 // pred_region
      %620 = vsyncadd [#allocation4], 0
      %s622 = sshll.u32 [#allocation5], 4
      %s623 = int_to_ptr.vmem [resolvable:$true] %s622
      %s624 = sshll.u32 %s2, 4
      %s625 = int_to_ptr.hbm [resolvable:$true] %s624
      %627 = dma.vmem_to_hbm [thread:$0]  %s623, 16, %s625, [#allocation4]
    $region17: #{forward.1} parent=1 // pred_fallthru
      _
    // Predicated region
    $region18: #{forward.1} parent=1 // pred_check
      _
    $region19: #{forward.1} parent=1 // pred_check_branch
      %629 = sbr.rel (0) target = $region21
    $region20: #{forward.1} parent=1 // pred_region
      %631 = dma.done [#allocation4], 16
    $region21: #{forward.1} parent=1 // pred_fallthru
      _
    %632 = vsyncpa [#allocation3], 1
    %633 = vsyncpa [#allocation4], 1

</llo_original>
